<compile_context>
chip_gen: v7x
topology: tpu7x:2x2x1
jax: 0.10.0
libtpu: 0.0.40
codegen_flags: <defaults>
</compile_context>

<pallas_src>
import jax
import jax.numpy as jnp
from jax.experimental import pallas as pl
from jax.experimental.pallas import tpu as pltpu


def _round_up(x, m):
    return ((x + m - 1) // m) * m


def _mlp_kernel(x_ref, w1_ref, b1_ref, w2_ref, b2_ref, o_ref):
    # hidden = relu(x @ W1 + b1)   (bf16 inputs, f32 MXU accumulation)
    h = jnp.dot(x_ref[...], w1_ref[...], preferred_element_type=jnp.float32)
    h = jnp.maximum(h + b1_ref[...], 0.0)          # bias add + ReLU in f32
    # out = h @ W2 + b2  (feed MXU bf16, accumulate f32)
    o = jnp.dot(h.astype(w2_ref.dtype), w2_ref[...],
                preferred_element_type=jnp.float32)
    o_ref[...] = (o + b2_ref[...]).astype(o_ref.dtype)


def ecg_ann_forward(x, w1, b1, w2, b2, *, tile_b=512):
    """x: (B, in) f32; w1: (in, hid); b1: (1, hid); w2: (hid, out); b2: (1, out)."""
    B, in_size = x.shape
    hid = w1.shape[1]
    out_size = w2.shape[1]

    # Pad hidden and output feature dims to lane-dense multiples of 128.
    hid_p = _round_up(hid, 128)
    out_p = _round_up(out_size, 128)

    w1p = jnp.zeros((in_size, hid_p), jnp.bfloat16).at[:, :hid].set(
        w1.astype(jnp.bfloat16))
    b1p = jnp.zeros((1, hid_p), jnp.float32).at[:, :hid].set(
        b1.astype(jnp.float32))
    w2p = jnp.zeros((hid_p, out_p), jnp.bfloat16).at[:hid, :out_size].set(
        w2.astype(jnp.bfloat16))
    b2p = jnp.zeros((1, out_p), jnp.float32).at[:, :out_size].set(
        b2.astype(jnp.float32))

    # Batch tile: big for large batches, clamped (and 8-aligned) for small ones.
    tile_b = max(8, min(tile_b, _round_up(B, 8)))
    B_p = _round_up(B, tile_b)
    xp = x.astype(jnp.bfloat16)
    if B_p != B:
        xp = jnp.pad(xp, ((0, B_p - B), (0, 0)))

    grid = (B_p // tile_b,)
    out = pl.pallas_call(
        _mlp_kernel,
        out_shape=jax.ShapeDtypeStruct((B_p, out_p), jnp.float32),
        grid=grid,
        in_specs=[
            # streamed per-tile activations
            pl.BlockSpec((tile_b, in_size), lambda i: (i, 0)),
            # weights/biases: constant index_map -> loaded once, VMEM-resident
            pl.BlockSpec((in_size, hid_p), lambda i: (0, 0)),
            pl.BlockSpec((1, hid_p), lambda i: (0, 0)),
            pl.BlockSpec((hid_p, out_p), lambda i: (0, 0)),
            pl.BlockSpec((1, out_p), lambda i: (0, 0)),
        ],
        out_specs=pl.BlockSpec((tile_b, out_p), lambda i: (i, 0)),
        compiler_params=pltpu.CompilerParams(
            dimension_semantics=("parallel",)),
    )(xp, w1p, b1p, w2p, b2p)
    return out[:B, :out_size]


def init_params(key, input_size=200, layers=(100,), out_size=5):
    """Deterministic init mimicking PyTorch nn.Linear default (U[-1/sqrt(fan_in), +])."""
    params = []
    n_in = input_size
    dims = list(layers) + [out_size]
    for n_out in dims:
        key, kw, kb = jax.random.split(key, 3)
        bound = 1.0 / (n_in ** 0.5)
        w = jax.random.uniform(kw, (n_in, n_out), jnp.float32, -bound, bound)
        b = jax.random.uniform(kb, (1, n_out), jnp.float32, -bound, bound)
        params.append((w, b))
        n_in = n_out
    return params


if __name__ == "__main__":
    key = jax.random.PRNGKey(0)
    input_size, hidden, out_size = 200, 100, 5
    batch = 16  # small test shape; kernel tiles/scales to arbitrary batch

    kx, kp = jax.random.split(key)
    x = jax.random.normal(kx, (batch, input_size), jnp.float32)
    (w1, b1), (w2, b2) = init_params(kp, input_size, (hidden,), out_size)

    out = ecg_ann_forward(x, w1, b1, w2, b2)
    out = jax.block_until_ready(out)

    # Reference in plain JAX with the same bf16 casts the kernel applies
    # (eval-mode dropout == identity).
    f32 = jnp.float32
    xb = x.astype(jnp.bfloat16).astype(f32)
    w1b = w1.astype(jnp.bfloat16).astype(f32)
    w2b = w2.astype(jnp.bfloat16).astype(f32)
    h_ref = jnp.maximum(xb @ w1b + b1, 0.0)
    ref = h_ref.astype(jnp.bfloat16).astype(f32) @ w2b + b2

    assert out.shape == (batch, out_size)
    assert jnp.allclose(out, ref, atol=1e-3, rtol=1e-3), float(
        jnp.max(jnp.abs(out - ref)))

    print("KERNEL_OK")
</pallas_src>

<mosaic_0001>
module attributes {stable_mosaic.version = 11 : i64} {
  func.func @_mlp_kernel(%arg0: i32, %arg1: memref<16x200xbf16, #tpu.memory_space<vmem>>, %arg2: memref<200x128xbf16, #tpu.memory_space<vmem>>, %arg3: memref<1x128xf32, #tpu.memory_space<vmem>>, %arg4: memref<128x128xbf16, #tpu.memory_space<vmem>>, %arg5: memref<1x128xf32, #tpu.memory_space<vmem>>, %arg6: memref<16x128xf32, #tpu.memory_space<vmem>>) attributes {dimension_semantics = [#tpu.dimension_semantics<parallel>], iteration_bounds = array<i64: 1>, scalar_prefetch = 0 : i64, scratch_operands = 0 : i64, tpu.core_type = #tpu.core_type<tc>, window_params = [{transform_indices = @transform_0, window_bounds = array<i64: 16, 200>}, {pipeline_mode = #tpu.pipeline_mode<synchronous>, transform_indices = @transform_1, window_bounds = array<i64: 200, 128>}, {pipeline_mode = #tpu.pipeline_mode<synchronous>, transform_indices = @transform_2, window_bounds = array<i64: 1, 128>}, {pipeline_mode = #tpu.pipeline_mode<synchronous>, transform_indices = @transform_3, window_bounds = array<i64: 128, 128>}, {pipeline_mode = #tpu.pipeline_mode<synchronous>, transform_indices = @transform_4, window_bounds = array<i64: 1, 128>}, {transform_indices = @transform_5, window_bounds = array<i64: 16, 128>}]} {
    %c0 = arith.constant 0 : index
    %c0_0 = arith.constant 0 : index
    %0 = vector.load %arg1[%c0, %c0_0] : memref<16x200xbf16, #tpu.memory_space<vmem>>, vector<16x200xbf16>
    %c0_1 = arith.constant 0 : index
    %c0_2 = arith.constant 0 : index
    %1 = vector.load %arg2[%c0_1, %c0_2] : memref<200x128xbf16, #tpu.memory_space<vmem>>, vector<200x128xbf16>
    %cst = arith.constant dense<0.000000e+00> : vector<16x128xf32>
    %2 = tpu.matmul %0, %1, %cst {dimension_numbers = #tpu.dot_dimension_numbers<[1], [0], [0], [1], [0, 0, 1, 1], [], []>} : vector<16x200xbf16>, vector<200x128xbf16>, vector<16x128xf32> -> vector<16x128xf32>
    %c0_3 = arith.constant 0 : index
    %c0_4 = arith.constant 0 : index
    %3 = vector.load %arg3[%c0_3, %c0_4] : memref<1x128xf32, #tpu.memory_space<vmem>>, vector<1x128xf32>
    %4 = vector.broadcast %3 : vector<1x128xf32> to vector<16x128xf32>
    %5 = arith.addf %2, %4 : vector<16x128xf32>
    %cst_5 = arith.constant 0.000000e+00 : f32
    %6 = vector.broadcast %cst_5 : f32 to vector<16x128xf32>
    %7 = arith.maximumf %5, %6 : vector<16x128xf32>
    %8 = arith.truncf %7 : vector<16x128xf32> to vector<16x128xbf16>
    %c0_6 = arith.constant 0 : index
    %c0_7 = arith.constant 0 : index
    %9 = vector.load %arg4[%c0_6, %c0_7] : memref<128x128xbf16, #tpu.memory_space<vmem>>, vector<128x128xbf16>
    %cst_8 = arith.constant dense<0.000000e+00> : vector<16x128xf32>
    %10 = tpu.matmul %8, %9, %cst_8 {dimension_numbers = #tpu.dot_dimension_numbers<[1], [0], [0], [1], [0, 0, 1, 1], [], []>} : vector<16x128xbf16>, vector<128x128xbf16>, vector<16x128xf32> -> vector<16x128xf32>
    %c0_9 = arith.constant 0 : index
    %c0_10 = arith.constant 0 : index
    %11 = vector.load %arg5[%c0_9, %c0_10] : memref<1x128xf32, #tpu.memory_space<vmem>>, vector<1x128xf32>
    %12 = vector.broadcast %11 : vector<1x128xf32> to vector<16x128xf32>
    %13 = arith.addf %10, %12 : vector<16x128xf32>
    %c0_11 = arith.constant 0 : index
    %c0_12 = arith.constant 0 : index
    %14 = vector.load %arg6[%c0_11, %c0_12] : memref<16x128xf32, #tpu.memory_space<vmem>>, vector<16x128xf32>
    tpu.vector_store %arg6[%c0_11, %c0_12], %13 {strides = array<i32>} : memref<16x128xf32, #tpu.memory_space<vmem>>, vector<16x128xf32>,
    return
  }
  func.func @transform_0(%arg0: i32) -> (i32, i32) {
    %c0_i32 = arith.constant 0 : i32
    %c0_i32_0 = arith.constant 0 : i32
    return %arg0, %c0_i32 : i32, i32
  }
  func.func @transform_1(%arg0: i32) -> (i32, i32) {
    %c0_i32 = arith.constant 0 : i32
    %c0_i32_0 = arith.constant 0 : i32
    %c0_i32_1 = arith.constant 0 : i32
    return %c0_i32, %c0_i32_0 : i32, i32
  }
  func.func @transform_2(%arg0: i32) -> (i32, i32) {
    %c0_i32 = arith.constant 0 : i32
    %c0_i32_0 = arith.constant 0 : i32
    %c0_i32_1 = arith.constant 0 : i32
    return %c0_i32, %c0_i32_0 : i32, i32
  }
  func.func @transform_3(%arg0: i32) -> (i32, i32) {
    %c0_i32 = arith.constant 0 : i32
    %c0_i32_0 = arith.constant 0 : i32
    %c0_i32_1 = arith.constant 0 : i32
    return %c0_i32, %c0_i32_0 : i32, i32
  }
  func.func @transform_4(%arg0: i32) -> (i32, i32) {
    %c0_i32 = arith.constant 0 : i32
    %c0_i32_0 = arith.constant 0 : i32
    %c0_i32_1 = arith.constant 0 : i32
    return %c0_i32, %c0_i32_0 : i32, i32
  }
  func.func @transform_5(%arg0: i32) -> (i32, i32) {
    %c0_i32 = arith.constant 0 : i32
    %c0_i32_0 = arith.constant 0 : i32
    return %arg0, %c0_i32 : i32, i32
  }
}

</mosaic_0001>

<llo_original>
// kernel: tpu_custom_call.1
$region0: #{tpu_custom_call.1}
  #allocation0 [shape = 'u32[]', space=smem, size = 0x4, offset = 0x4, fixed_abs, tag = 'smem constant byte address 0x4 - core index']
  #allocation1 [shape = 'u32[144,128]{1,0:T(1,128)}', space=vmem, size = 0x12000, scoped, tag = 'internal scratch']
  %s0 = inlined_call_operand.hbm [shape: bf16[16,200], index: 0, kind: input, shape index: {}]
  %s1 = inlined_call_operand.hbm [shape: bf16[200,128], index: 1, kind: input, shape index: {}]
  %s2 = inlined_call_operand.vmem [shape: f32[1,128], index: 2, kind: input, shape index: {}]
  %s3 = inlined_call_operand.hbm [shape: bf16[128,128], index: 3, kind: input, shape index: {}]
  %s4 = inlined_call_operand.vmem [shape: f32[1,128], index: 4, kind: input, shape index: {}]
  %s5 = inlined_call_operand.hbm [shape: f32[16,128], index: 5, kind: output, shape index: {}]
  %s6 = sld [smem:[#allocation0]]
  $region42: #{tpu_custom_call.1} parent=0
    _
  %s8 = ssub.s32 1, %s6
  %s9 = scalar_select 0, %s8, %s6
  $region1: #{tpu_custom_call.1} parent=0
    #allocation2 [shape = 'u8[8192]{0}', space=vmem, size = 0x2000, scoped, tag = 'input window, operand 0, single buffered']
    #allocation3 [shape = 's32[1]{0}', space=sflag, size = 0x4, scoped, tag = 'scoped memory for tpu_custom_call.1']
    #allocation4 [shape = 's32[1]{0}', space=sflag, size = 0x4, scoped, tag = 'scoped memory for tpu_custom_call.1']
    #allocation5 [shape = 'u8[51200]{0}', space=vmem, size = 0xc800, scoped, tag = 'input window, operand 1, single buffered']
    #allocation6 [shape = 's32[1]{0}', space=sflag, size = 0x4, scoped, tag = 'scoped memory for tpu_custom_call.1']
    #allocation7 [shape = 'u8[32768]{0}', space=vmem, size = 0x8000, scoped, tag = 'input window, operand 3, single buffered']
    #allocation8 [shape = 'u8[8192]{0}', space=vmem, size = 0x2000, scoped, tag = 'output window, operand 0, single buffered']
    %10 = vsyncpa [#allocation3], 0
    %11 = vsyncpa [#allocation6], 0
    %12 = vsyncpa [#allocation4], 0
    // Predicated region
    $region2: #{tpu_custom_call.1} parent=1 // pred_check
      _
    $region3: #{tpu_custom_call.1} parent=1 // pred_check_branch
      %14 = sbr.rel (0) target = $region5
    $region4: #{tpu_custom_call.1} parent=1 // pred_region
      %s16 = ssub.s32 256, 256
      %17 = vsyncadd [#allocation3], %s16
      %s18 = sshll.u32 [#allocation2], 4
      %s19 = int_to_ptr.vmem [resolvable:$true] %s18
      %24 = dma.hbm_to_vmem [thread:$0]  %s0, 256, %s19, [#allocation3], 128, 128, 8
    $region5: #{tpu_custom_call.1} parent=1 // pred_fallthru
      _
    // Predicated region
    $region6: #{tpu_custom_call.1} parent=1 // pred_check
      _
    $region7: #{tpu_custom_call.1} parent=1 // pred_check_branch
      %26 = sbr.rel (0) target = $region9
    $region8: #{tpu_custom_call.1} parent=1 // pred_region
      %s28 = ssub.s32 1600, 1600
      %29 = vsyncadd [#allocation6], %s28
      %s30 = sshll.u32 [#allocation5], 4
      %s31 = int_to_ptr.vmem [resolvable:$true] %s30
      %36 = dma.hbm_to_vmem [thread:$0]  %s1, 1600, %s31, [#allocation6], 64, 64, 4
    $region9: #{tpu_custom_call.1} parent=1 // pred_fallthru
      _
    // Predicated region
    $region10: #{tpu_custom_call.1} parent=1 // pred_check
      _
    $region11: #{tpu_custom_call.1} parent=1 // pred_check_branch
      %38 = sbr.rel (0) target = $region13
    $region12: #{tpu_custom_call.1} parent=1 // pred_region
      _
    $region13: #{tpu_custom_call.1} parent=1 // pred_fallthru
      _
    // Predicated region
    $region14: #{tpu_custom_call.1} parent=1 // pred_check
      _
    $region15: #{tpu_custom_call.1} parent=1 // pred_check_branch
      %40 = sbr.rel (0) target = $region17
    $region16: #{tpu_custom_call.1} parent=1 // pred_region
      %s42 = ssub.s32 1024, 1024
      %43 = vsyncadd [#allocation6], %s42
      %s44 = sshll.u32 [#allocation7], 4
      %s45 = int_to_ptr.vmem [resolvable:$true] %s44
      %50 = dma.hbm_to_vmem [thread:$0]  %s3, 1024, %s45, [#allocation6], 64, 64, 4
    $region17: #{tpu_custom_call.1} parent=1 // pred_fallthru
      _
    // Predicated region
    $region18: #{tpu_custom_call.1} parent=1 // pred_check
      _
    $region19: #{tpu_custom_call.1} parent=1 // pred_check_branch
      %52 = sbr.rel (0) target = $region21
    $region20: #{tpu_custom_call.1} parent=1 // pred_region
      _
    $region21: #{tpu_custom_call.1} parent=1 // pred_fallthru
      _
    // Predicated region
    $region22: #{tpu_custom_call.1} parent=1 // pred_check
      _
    $region23: #{tpu_custom_call.1} parent=1 // pred_check_branch
      %54 = sbr.rel (0) target = $region25
    $region24: #{tpu_custom_call.1} parent=1 // pred_region
      %55 = dma.done [#allocation3], 256
    $region25: #{tpu_custom_call.1} parent=1 // pred_fallthru
      _
    // Predicated region
    $region26: #{tpu_custom_call.1} parent=1 // pred_check
      _
    $region27: #{tpu_custom_call.1} parent=1 // pred_check_branch
      %57 = sbr.rel (0) target = $region29
    $region28: #{tpu_custom_call.1} parent=1 // pred_region
      %58 = dma.done [#allocation6], 1600
    $region29: #{tpu_custom_call.1} parent=1 // pred_fallthru
      _
    // Predicated region
    $region30: #{tpu_custom_call.1} parent=1 // pred_check
      _
    $region31: #{tpu_custom_call.1} parent=1 // pred_check_branch
      %60 = sbr.rel (0) target = $region33
    $region32: #{tpu_custom_call.1} parent=1 // pred_region
      %61 = dma.done [#allocation6], 1024
    $region33: #{tpu_custom_call.1} parent=1 // pred_fallthru
      _
    %v63 = vld [vmem:[#allocation2] sm:$0xff]
    %v64 = vld [vmem:[#allocation2 + $0x8] sm:$0xff]
    %v65 = vld [vmem:[#allocation5] sm:$0xf]
    %v66 = vld [vmem:[#allocation5 + $0x4] sm:$0xf]
    %v67 = vld [vmem:[#allocation5 + $0x8] sm:$0xf]
    %v68 = vld [vmem:[#allocation5 + $0xc] sm:$0xf]
    %v69 = vld [vmem:[#allocation5 + $0x10] sm:$0xf]
    %v70 = vld [vmem:[#allocation5 + $0x14] sm:$0xf]
    %v71 = vld [vmem:[#allocation5 + $0x18] sm:$0xf]
    %v72 = vld [vmem:[#allocation5 + $0x1c] sm:$0xf]
    %v73 = vld [vmem:[#allocation5 + $0x20] sm:$0xf]
    %v74 = vld [vmem:[#allocation5 + $0x24] sm:$0xf]
    %v75 = vld [vmem:[#allocation5 + $0x28] sm:$0xf]
    %v76 = vld [vmem:[#allocation5 + $0x2c] sm:$0xf]
    %v77 = vld [vmem:[#allocation5 + $0x30] sm:$0xf]
    %v78 = vld [vmem:[#allocation5 + $0x34] sm:$0xf]
    %v79 = vld [vmem:[#allocation5 + $0x38] sm:$0xf]
    %v80 = vld [vmem:[#allocation5 + $0x3c] sm:$0xf]
    %v81 = vld [vmem:[#allocation5 + $0x40] sm:$0xf]
    %v82 = vld [vmem:[#allocation5 + $0x44] sm:$0xf]
    %v83 = vld [vmem:[#allocation5 + $0x48] sm:$0xf]
    %v84 = vld [vmem:[#allocation5 + $0x4c] sm:$0xf]
    %v85 = vld [vmem:[#allocation5 + $0x50] sm:$0xf]
    %v86 = vld [vmem:[#allocation5 + $0x54] sm:$0xf]
    %v87 = vld [vmem:[#allocation5 + $0x58] sm:$0xf]
    %v88 = vld [vmem:[#allocation5 + $0x5c] sm:$0xf]
    %v89 = vld [vmem:[#allocation5 + $0x60] sm:$0xf]
    %v90 = vld [vmem:[%s2] sm:$0x1]
    %v92 = vlaneseq
    %v93 = vshrl.u32 %v92, 7
    %v94 = vsub.s32 0, %v93
    %v95 = vrot.slane %v90, %v94
    %v99 = vunpack.c.l.b16 %v63
    %v100 = vunpack.c.h.b16 %v63
    %v101 = vunpack.c.l.b16 %v64
    %v102 = vunpack.c.h.b16 %v64
    %v103 = vpack.c.b16 %v101, %v99
    %v104 = vpack.c.b16 %v102, %v100
    %v131 = vunpack.c.l.b16 %v65
    %v132 = vunpack.c.l.b16 %v66
    %v133 = vunpack.c.l.b16 %v67
    %v134 = vunpack.c.l.b16 %v68
    %v135 = vunpack.c.l.b16 %v69
    %v136 = vunpack.c.l.b16 %v70
    %v137 = vunpack.c.l.b16 %v71
    %v138 = vunpack.c.l.b16 %v72
    %v139 = vunpack.c.l.b16 %v73
    %v140 = vunpack.c.l.b16 %v74
    %v141 = vunpack.c.l.b16 %v75
    %v142 = vunpack.c.l.b16 %v76
    %v143 = vunpack.c.l.b16 %v77
    %v144 = vunpack.c.l.b16 %v78
    %v145 = vunpack.c.l.b16 %v79
    %v146 = vunpack.c.l.b16 %v80
    %v147 = vunpack.c.l.b16 %v81
    %v148 = vunpack.c.l.b16 %v82
    %v149 = vunpack.c.l.b16 %v83
    %v150 = vunpack.c.l.b16 %v84
    %v151 = vunpack.c.l.b16 %v85
    %v152 = vunpack.c.l.b16 %v86
    %v153 = vunpack.c.l.b16 %v87
    %v154 = vunpack.c.l.b16 %v88
    %v155 = vunpack.c.l.b16 %v89
    %v156 = vpack.c.b16 %v132, %v131
    %v157 = vpack.c.b16 %v134, %v133
    %v158 = vpack.c.b16 %v136, %v135
    %v159 = vpack.c.b16 %v138, %v137
    %v160 = vpack.c.b16 %v140, %v139
    %v161 = vpack.c.b16 %v142, %v141
    %v162 = vpack.c.b16 %v144, %v143
    %v163 = vpack.c.b16 %v146, %v145
    %v164 = vpack.c.b16 %v148, %v147
    %v165 = vpack.c.b16 %v150, %v149
    %v166 = vpack.c.b16 %v152, %v151
    %v167 = vpack.c.b16 %v154, %v153
    %v168 = vpack.c.b16 %v155, %v155
    %vm181 = vcmask 588800
    %v183 = vsel %vm181, %v104, 0
    %vm185 = vcmask 1043456
    %v187 = vsel %vm185, %v168, 0
    %189 = vmatprep.subr.bf16.mxu0 0
    %190 = vmatpush1.bf16.msra.mxu0 %v156
    %191 = vmatprep.subr.bf16.mxu0 0
    %192 = vmatpush1.bf16.msra.mxu0 %v157
    %193 = vmatprep.subr.bf16.mxu0 0
    %194 = vmatpush1.bf16.msra.mxu0 %v158
    %195 = vmatprep.subr.bf16.mxu0 0
    %196 = vmatpush1.bf16.msra.mxu0 %v159
    %197 = vmatprep.subr.bf16.mxu0 0
    %198 = vmatpush1.bf16.msra.mxu0 %v160
    %199 = vmatprep.subr.bf16.mxu0 0
    %200 = vmatpush1.bf16.msra.mxu0 %v161
    %201 = vmatprep.subr.bf16.mxu0 0
    %202 = vmatpush1.bf16.msra.mxu0 %v162
    %203 = vmatprep.subr.bf16.mxu0 0
    %204 = vmatpush1.bf16.msra.mxu0 %v163
    %205 = vmatprep.subr.bf16.mxu0 0
    %206 = vmatpush1.bf16.msra.mxu0 %v164
    %207 = vmatprep.subr.bf16.mxu0 0
    %208 = vmatpush1.bf16.msra.mxu0 %v165
    %209 = vmatprep.subr.bf16.mxu0 0
    %210 = vmatpush1.bf16.msra.mxu0 %v166
    %211 = vmatprep.subr.bf16.mxu0 0
    %212 = vmatpush1.bf16.msra.mxu0 %v167
    %213 = vmatprep.subr.bf16.mxu0 0
    %214 = vmatpush1.bf16.msra.mxu0 %v187
    %215 = vmatprep.subr.bf16.mxu0 0
    %216 = vmatpush1.bf16.msra.mxu0 0
    %217 = vmatprep.subr.bf16.mxu0 0
    %218 = vmatpush1.bf16.msra.mxu0 0
    %219 = vmatprep.subr.bf16.mxu0 0
    %220 = vmatpush1.bf16.msra.mxu0 0
    %221 = vmatprep.mubr.bf16.mxu0 %v183
    %222 = vmatmul.mubr.bf16.gmra.mrb[0].mxu0 %v103
    %v223 = vpop.f32.mrb[0].mxu0
    %v224 = vadd.f32 %v95, %v223
    %v225 = vpop.f32.mrb[0].mxu0
    %v226 = vpop.f32.mrb[0].mxu0
    %v227 = vadd.f32 %v95, %v226
    %v228 = vpop.f32.mrb[0].mxu0
    %229 = vdwg.mxu0
    %v230 = vmax.f32 %v224, 0.0
    %v231 = vmax.f32 %v227, 0.0
    %v232 = vpack.c.bf16 %v231, %v230
    %v233 = vld [vmem:[#allocation7] sm:$0xf]
    %v234 = vld [vmem:[#allocation7 + $0x4] sm:$0xf]
    %v235 = vld [vmem:[#allocation7 + $0x8] sm:$0xf]
    %v236 = vld [vmem:[#allocation7 + $0xc] sm:$0xf]
    %v237 = vld [vmem:[#allocation7 + $0x10] sm:$0xf]
    %v238 = vld [vmem:[#allocation7 + $0x14] sm:$0xf]
    %v239 = vld [vmem:[#allocation7 + $0x18] sm:$0xf]
    %v240 = vld [vmem:[#allocation7 + $0x1c] sm:$0xf]
    %v241 = vld [vmem:[#allocation7 + $0x20] sm:$0xf]
    %v242 = vld [vmem:[#allocation7 + $0x24] sm:$0xf]
    %v243 = vld [vmem:[#allocation7 + $0x28] sm:$0xf]
    %v244 = vld [vmem:[#allocation7 + $0x2c] sm:$0xf]
    %v245 = vld [vmem:[#allocation7 + $0x30] sm:$0xf]
    %v246 = vld [vmem:[#allocation7 + $0x34] sm:$0xf]
    %v247 = vld [vmem:[#allocation7 + $0x38] sm:$0xf]
    %v248 = vld [vmem:[#allocation7 + $0x3c] sm:$0xf]
    %v249 = vld [vmem:[%s4] sm:$0x1]
    %v251 = vlaneseq
    %v252 = vshrl.u32 %v251, 7
    %v253 = vsub.s32 0, %v252
    %v254 = vrot.slane %v249, %v253
    %v272 = vunpack.c.l.b16 %v233
    %v273 = vunpack.c.l.b16 %v234
    %v274 = vunpack.c.l.b16 %v235
    %v275 = vunpack.c.l.b16 %v236
    %v276 = vunpack.c.l.b16 %v237
    %v277 = vunpack.c.l.b16 %v238
    %v278 = vunpack.c.l.b16 %v239
    %v279 = vunpack.c.l.b16 %v240
    %v280 = vunpack.c.l.b16 %v241
    %v281 = vunpack.c.l.b16 %v242
    %v282 = vunpack.c.l.b16 %v243
    %v283 = vunpack.c.l.b16 %v244
    %v284 = vunpack.c.l.b16 %v245
    %v285 = vunpack.c.l.b16 %v246
    %v286 = vunpack.c.l.b16 %v247
    %v287 = vunpack.c.l.b16 %v248
    %v288 = vpack.c.b16 %v273, %v272
    %v289 = vpack.c.b16 %v275, %v274
    %v290 = vpack.c.b16 %v277, %v276
    %v291 = vpack.c.b16 %v279, %v278
    %v292 = vpack.c.b16 %v281, %v280
    %v293 = vpack.c.b16 %v283, %v282
    %v294 = vpack.c.b16 %v285, %v284
    %v295 = vpack.c.b16 %v287, %v286
    %304 = vmatprep.subr.bf16.mxu0 0
    %305 = vmatpush1.bf16.msra.mxu0 %v288
    %306 = vmatprep.subr.bf16.mxu0 0
    %307 = vmatpush1.bf16.msra.mxu0 %v289
    %308 = vmatprep.subr.bf16.mxu0 0
    %309 = vmatpush1.bf16.msra.mxu0 %v290
    %310 = vmatprep.subr.bf16.mxu0 0
    %311 = vmatpush1.bf16.msra.mxu0 %v291
    %312 = vmatprep.subr.bf16.mxu0 0
    %313 = vmatpush1.bf16.msra.mxu0 %v292
    %314 = vmatprep.subr.bf16.mxu0 0
    %315 = vmatpush1.bf16.msra.mxu0 %v293
    %316 = vmatprep.subr.bf16.mxu0 0
    %317 = vmatpush1.bf16.msra.mxu0 %v294
    %318 = vmatprep.subr.bf16.mxu0 0
    %319 = vmatpush1.bf16.msra.mxu0 %v295
    %320 = vmatprep.subr.bf16.mxu0 0
    %321 = vmatpush1.bf16.msra.mxu0 0
    %322 = vmatprep.subr.bf16.mxu0 0
    %323 = vmatpush1.bf16.msra.mxu0 0
    %324 = vmatprep.subr.bf16.mxu0 0
    %325 = vmatpush1.bf16.msra.mxu0 0
    %326 = vmatprep.subr.bf16.mxu0 0
    %327 = vmatpush1.bf16.msra.mxu0 0
    %328 = vmatprep.subr.bf16.mxu0 0
    %329 = vmatpush1.bf16.msra.mxu0 0
    %330 = vmatprep.subr.bf16.mxu0 0
    %331 = vmatpush1.bf16.msra.mxu0 0
    %332 = vmatprep.subr.bf16.mxu0 0
    %333 = vmatpush1.bf16.msra.mxu0 0
    %334 = vmatprep.subr.bf16.mxu0 0
    %335 = vmatpush1.bf16.msra.mxu0 0
    %336 = vmatprep.mubr.bf16.mxu0 0
    %337 = vmatmul.mubr.bf16.gmra.mrb[0].mxu0 %v232
    %v338 = vpop.f32.mrb[0].mxu0
    %v339 = vadd.f32 %v254, %v338
    %v340 = vpop.f32.mrb[0].mxu0
    %v341 = vpop.f32.mrb[0].mxu0
    %v342 = vadd.f32 %v254, %v341
    %v343 = vpop.f32.mrb[0].mxu0
    %344 = vdwg.mxu0
    %345 = vst [vmem:[#allocation8] sm:$0xff] %v339
    %346 = vst [vmem:[#allocation8 + $0x8] sm:$0xff] %v342
    // Predicated region
    $region34: #{tpu_custom_call.1} parent=1 // pred_check
      _
    $region35: #{tpu_custom_call.1} parent=1 // pred_check_branch
      %348 = sbr.rel (0) target = $region37
    $region36: #{tpu_custom_call.1} parent=1 // pred_region
      %s350 = ssub.s32 256, 256
      %351 = vsyncadd [#allocation4], %s350
      %s352 = sshll.u32 [#allocation8], 4
      %s353 = int_to_ptr.vmem [resolvable:$true] %s352
      %358 = dma.vmem_to_hbm [thread:$0]  %s353, 256, %s5, [#allocation4], 128, 128, 8
    $region37: #{tpu_custom_call.1} parent=1 // pred_fallthru
      _
    // Predicated region
    $region38: #{tpu_custom_call.1} parent=1 // pred_check
      _
    $region39: #{tpu_custom_call.1} parent=1 // pred_check_branch
      %360 = sbr.rel (0) target = $region41
    $region40: #{tpu_custom_call.1} parent=1 // pred_region
      %361 = dma.done [#allocation4], 256
    $region41: #{tpu_custom_call.1} parent=1 // pred_fallthru
      _
    %362 = vsyncpa [#allocation3], 1
    %363 = vsyncpa [#allocation6], 1
    %364 = vsyncpa [#allocation4], 1

</llo_original>
